<compile_context>
chip_gen: v5e
topology: v5e:2x2
jax: 0.10.0
libtpu: 0.0.40
codegen_flags: <defaults>
</compile_context>

<pallas_src>
import functools

import jax
import jax.numpy as jnp
from jax.experimental import pallas as pl
from jax.experimental.pallas import tpu as pltpu


# ----------------------------------------------------------------------------- kernel
def actor_critic_kernel(x_ref, w1_ref, b1_ref, w2_ref, b2_ref, w3_ref, b3_ref,
                        out_ref, *, action_dim, dot_dtype):
    x = x_ref[...]                                                     # (TB, S) dot_dtype

    # fused actor+critic MLP: 3 MXU dots instead of 6. Dots take dot_dtype
    # (bf16 -> ~3x fewer MXU passes, half the DMA bytes); bias/tanh/softmax
    # stay in f32 (v5e VPU/EUP have no bf16).
    h = jnp.tanh(jnp.dot(x, w1_ref[...], preferred_element_type=jnp.float32)
                 + b1_ref[...])                                        # (TB, 2H) f32
    h = jnp.tanh(jnp.dot(h.astype(dot_dtype), w2_ref[...],
                         preferred_element_type=jnp.float32)
                 + b2_ref[...])                                        # (TB, 2H) f32
    z = (jnp.dot(h.astype(dot_dtype), w3_ref[...],
                 preferred_element_type=jnp.float32)
         + b3_ref[...])                                                # (TB, 128) f32

    # masked, numerically-stable softmax over lanes [0, action_dim);
    # lane action_dim carries the critic value; lanes beyond are zero padding.
    col = jax.lax.broadcasted_iota(jnp.int32, z.shape, dimension=1)
    is_logit = col < action_dim
    m = jnp.max(jnp.where(is_logit, z, jnp.float32(-1e30)), axis=-1, keepdims=True)
    e = jnp.where(is_logit, jnp.exp(z - m), 0.0)
    denom = jnp.sum(e, axis=-1, keepdims=True)
    probs = e / denom          # exact reciprocal: rows sum to 1 at f32 accuracy

    # lane-dense (multiple-of-128) unmasked store; wrapper slices padding off.
    out_ref[...] = jnp.where(is_logit, probs, z)


# ----------------------------------------------------------------------------- packing / wrapper
def _round_up(n, m):
    return ((n + m - 1) // m) * m


def pack_fused_params(p, *, dot_dtype=jnp.bfloat16, out_lanes=128):
    """Pack per-head params into fused, lane-dense weights (done once, outside
    the kernel). Output lanes: [0, A) actor logits, A critic value, rest zero."""
    H = p["a_w2"].shape[0]
    A = p["a_w3"].shape[1]
    n_out = _round_up(A + 1, out_lanes)

    w1 = jnp.concatenate([p["a_w1"], p["c_w1"]], axis=1)               # (S, 2H)
    b1 = jnp.concatenate([p["a_b1"], p["c_b1"]], axis=1)               # (1, 2H)

    zHH = jnp.zeros((H, H), jnp.float32)
    w2 = jnp.concatenate(
        [jnp.concatenate([p["a_w2"], zHH], axis=1),
         jnp.concatenate([zHH, p["c_w2"]], axis=1)], axis=0)           # (2H, 2H)
    b2 = jnp.concatenate([p["a_b2"], p["c_b2"]], axis=1)               # (1, 2H)

    w3 = jnp.zeros((2 * H, n_out), jnp.float32)
    w3 = w3.at[:H, :A].set(p["a_w3"])
    w3 = w3.at[H:, A:A + 1].set(p["c_w3"])                             # (2H, n_out)
    b3 = jnp.zeros((1, n_out), jnp.float32)
    b3 = b3.at[:, :A].set(p["a_b3"])
    b3 = b3.at[:, A:A + 1].set(p["c_b3"])                              # (1, n_out)

    return dict(
        w1=w1.astype(dot_dtype), b1=b1,
        w2=w2.astype(dot_dtype), b2=b2,
        w3=w3.astype(dot_dtype), b3=b3,
        action_dim=A, n_out=n_out, dot_dtype=dot_dtype,
    )


def _select_batch_tile(B, block_b):
    """Batch tile: minimal pad waste, MXU-width aligned when large, and >=2
    grid steps for big single-tile batches so v7x can use both TensorCores."""
    n_steps = pl.cdiv(B, block_b)
    tb = _round_up(pl.cdiv(B, n_steps), 8)
    if tb >= 256:
        tb = _round_up(tb, 256)          # v6e/v7x 256-wide MXU
    elif tb >= 128:
        tb = _round_up(tb, 128)          # v5e 128-wide MXU
    if pl.cdiv(B, tb) == 1 and tb >= 256:
        tb //= 2                         # keep >=2 parallel grid steps (still 128-aligned)
    return tb


def actor_critic_forward(x, fused, *, block_b=2048):
    """x: (B, state_dim) float32. fused: dict from pack_fused_params.
    Returns (probs (B, A), value (B, 1)), both float32."""
    B, S = x.shape
    H2 = fused["w1"].shape[1]
    n_out = fused["n_out"]
    action_dim = fused["action_dim"]
    dot_dtype = fused["dot_dtype"]

    tb = _select_batch_tile(B, block_b)
    Bp = _round_up(B, tb)
    xb = x.astype(dot_dtype)
    if Bp != B:
        xb = jnp.pad(xb, ((0, Bp - B), (0, 0)))

    const = lambda i: (0, 0)   # weights DMA'd once, stay resident across grid steps

    dot_bytes = jnp.dtype(dot_dtype).itemsize
    cost = pl.CostEstimate(
        flops=2 * Bp * (S * H2 + H2 * H2 + H2 * n_out),
        transcendentals=Bp * (2 * H2 + n_out),
        bytes_accessed=(Bp * S * dot_bytes + Bp * n_out * 4
                        + (S * H2 + H2 * H2 + H2 * n_out) * dot_bytes
                        + (2 * H2 + n_out) * 4),
    )

    out = pl.pallas_call(
        functools.partial(actor_critic_kernel, action_dim=action_dim,
                          dot_dtype=dot_dtype),
        out_shape=jax.ShapeDtypeStruct((Bp, n_out), jnp.float32),
        grid=(Bp // tb,),
        in_specs=[
            pl.BlockSpec((tb, S), lambda i: (i, 0)),     # x   : tiled over batch
            pl.BlockSpec((S, H2), const),                # W1
            pl.BlockSpec((1, H2), const),                # b1
            pl.BlockSpec((H2, H2), const),               # W2
            pl.BlockSpec((1, H2), const),                # b2
            pl.BlockSpec((H2, n_out), const),            # W3 (lane-dense output dim)
            pl.BlockSpec((1, n_out), const),             # b3
        ],
        out_specs=pl.BlockSpec((tb, n_out), lambda i: (i, 0)),
        compiler_params=pltpu.CompilerParams(
            dimension_semantics=("parallel",)),
        cost_estimate=cost,
    )(xb, fused["w1"], fused["b1"], fused["w2"], fused["b2"],
      fused["w3"], fused["b3"])

    out = out[:B]
    return out[:, :action_dim], out[:, action_dim:action_dim + 1]


# ----------------------------------------------------------------------------- init / reference
def init_params(key, state_dim, action_dim, n_latent_var):
    """Deterministic init mimicking nn.Linear default (uniform +/- 1/sqrt(fan_in)).
    Weights stored transposed: (in_features, out_features)."""
    def linear(k, fan_in, fan_out):
        kw, kb = jax.random.split(k)
        bound = 1.0 / jnp.sqrt(jnp.float32(fan_in))
        w = jax.random.uniform(kw, (fan_in, fan_out), jnp.float32, -bound, bound)
        b = jax.random.uniform(kb, (1, fan_out), jnp.float32, -bound, bound)
        return w, b

    keys = jax.random.split(key, 6)
    a_w1, a_b1 = linear(keys[0], state_dim, n_latent_var)
    a_w2, a_b2 = linear(keys[1], n_latent_var, n_latent_var)
    a_w3, a_b3 = linear(keys[2], n_latent_var, action_dim)
    c_w1, c_b1 = linear(keys[3], state_dim, n_latent_var)
    c_w2, c_b2 = linear(keys[4], n_latent_var, n_latent_var)
    c_w3, c_b3 = linear(keys[5], n_latent_var, 1)
    return dict(
        a_w1=a_w1, a_b1=a_b1, a_w2=a_w2, a_b2=a_b2, a_w3=a_w3, a_b3=a_b3,
        c_w1=c_w1, c_b1=c_b1, c_w2=c_w2, c_b2=c_b2, c_w3=c_w3, c_b3=c_b3,
    )


def reference_forward(x, p):
    h = jnp.tanh(x @ p["a_w1"] + p["a_b1"])
    h = jnp.tanh(h @ p["a_w2"] + p["a_b2"])
    probs = jax.nn.softmax(h @ p["a_w3"] + p["a_b3"], axis=-1)
    g = jnp.tanh(x @ p["c_w1"] + p["c_b1"])
    g = jnp.tanh(g @ p["c_w2"] + p["c_b2"])
    value = g @ p["c_w3"] + p["c_b3"]
    return probs, value


# ----------------------------------------------------------------------------- main
if __name__ == "__main__":
    # Small shapes consistent with the module's forward.
    batch, state_dim, action_dim, n_latent_var = 8, 16, 10, 32

    key = jax.random.PRNGKey(0)
    k_x, k_p = jax.random.split(key)
    x = jax.random.normal(k_x, (batch, state_dim), dtype=jnp.float32)
    params = init_params(k_p, state_dim, action_dim, n_latent_var)
    fused = pack_fused_params(params)

    probs, value = actor_critic_forward(x, fused)
    jax.block_until_ready((probs, value))

    ref_probs, ref_value = reference_forward(x, params)
    assert probs.shape == (batch, action_dim)
    assert value.shape == (batch, 1)
    # bf16 MXU inputs -> relaxed tolerance vs the pure-f32 reference
    assert jnp.allclose(probs, ref_probs, atol=1e-2, rtol=1e-2), \
        float(jnp.max(jnp.abs(probs - ref_probs)))
    assert jnp.allclose(value, ref_value, atol=2e-2, rtol=2e-2), \
        float(jnp.max(jnp.abs(value - ref_value)))
    # exact softmax division -> rows sum to 1 at f32 accuracy
    assert jnp.allclose(jnp.sum(probs, axis=-1), 1.0, atol=1e-4)

    print("KERNEL_OK")
</pallas_src>

<mosaic_0001>
module attributes {stable_mosaic.version = 11 : i64} {
  func.func @actor_critic_kernel(%arg0: i32, %arg1: memref<8x16xbf16, #tpu.memory_space<vmem>>, %arg2: memref<16x64xbf16, #tpu.memory_space<vmem>>, %arg3: memref<1x64xf32, #tpu.memory_space<vmem>>, %arg4: memref<64x64xbf16, #tpu.memory_space<vmem>>, %arg5: memref<1x64xf32, #tpu.memory_space<vmem>>, %arg6: memref<64x128xbf16, #tpu.memory_space<vmem>>, %arg7: memref<1x128xf32, #tpu.memory_space<vmem>>, %arg8: memref<8x128xf32, #tpu.memory_space<vmem>>) attributes {dimension_semantics = [#tpu.dimension_semantics<parallel>], iteration_bounds = array<i64: 1>, scalar_prefetch = 0 : i64, scratch_operands = 0 : i64, tpu.core_type = #tpu.core_type<tc>, window_params = [{transform_indices = @transform_0, window_bounds = array<i64: 8, 16>}, {pipeline_mode = #tpu.pipeline_mode<synchronous>, transform_indices = @transform_1, window_bounds = array<i64: 16, 64>}, {pipeline_mode = #tpu.pipeline_mode<synchronous>, transform_indices = @transform_2, window_bounds = array<i64: 1, 64>}, {pipeline_mode = #tpu.pipeline_mode<synchronous>, transform_indices = @transform_3, window_bounds = array<i64: 64, 64>}, {pipeline_mode = #tpu.pipeline_mode<synchronous>, transform_indices = @transform_4, window_bounds = array<i64: 1, 64>}, {pipeline_mode = #tpu.pipeline_mode<synchronous>, transform_indices = @transform_5, window_bounds = array<i64: 64, 128>}, {pipeline_mode = #tpu.pipeline_mode<synchronous>, transform_indices = @transform_6, window_bounds = array<i64: 1, 128>}, {transform_indices = @transform_7, window_bounds = array<i64: 8, 128>}]} {
    %c0 = arith.constant 0 : index
    %c0_0 = arith.constant 0 : index
    %0 = vector.load %arg1[%c0, %c0_0] : memref<8x16xbf16, #tpu.memory_space<vmem>>, vector<8x16xbf16>
    %c0_1 = arith.constant 0 : index
    %c0_2 = arith.constant 0 : index
    %1 = vector.load %arg2[%c0_1, %c0_2] : memref<16x64xbf16, #tpu.memory_space<vmem>>, vector<16x64xbf16>
    %cst = arith.constant dense<0.000000e+00> : vector<8x64xf32>
    %2 = tpu.matmul %0, %1, %cst {dimension_numbers = #tpu.dot_dimension_numbers<[1], [0], [0], [1], [0, 0, 1, 1], [], []>} : vector<8x16xbf16>, vector<16x64xbf16>, vector<8x64xf32> -> vector<8x64xf32>
    %c0_3 = arith.constant 0 : index
    %c0_4 = arith.constant 0 : index
    %3 = vector.load %arg3[%c0_3, %c0_4] : memref<1x64xf32, #tpu.memory_space<vmem>>, vector<1x64xf32>
    %4 = vector.broadcast %3 : vector<1x64xf32> to vector<8x64xf32>
    %5 = arith.addf %2, %4 : vector<8x64xf32>
    %6 = math.tanh %5 : vector<8x64xf32>
    %7 = arith.truncf %6 : vector<8x64xf32> to vector<8x64xbf16>
    %c0_5 = arith.constant 0 : index
    %c0_6 = arith.constant 0 : index
    %8 = vector.load %arg4[%c0_5, %c0_6] : memref<64x64xbf16, #tpu.memory_space<vmem>>, vector<64x64xbf16>
    %cst_7 = arith.constant dense<0.000000e+00> : vector<8x64xf32>
    %9 = tpu.matmul %7, %8, %cst_7 {dimension_numbers = #tpu.dot_dimension_numbers<[1], [0], [0], [1], [0, 0, 1, 1], [], []>} : vector<8x64xbf16>, vector<64x64xbf16>, vector<8x64xf32> -> vector<8x64xf32>
    %c0_8 = arith.constant 0 : index
    %c0_9 = arith.constant 0 : index
    %10 = vector.load %arg5[%c0_8, %c0_9] : memref<1x64xf32, #tpu.memory_space<vmem>>, vector<1x64xf32>
    %11 = vector.broadcast %10 : vector<1x64xf32> to vector<8x64xf32>
    %12 = arith.addf %9, %11 : vector<8x64xf32>
    %13 = math.tanh %12 : vector<8x64xf32>
    %14 = arith.truncf %13 : vector<8x64xf32> to vector<8x64xbf16>
    %c0_10 = arith.constant 0 : index
    %c0_11 = arith.constant 0 : index
    %15 = vector.load %arg6[%c0_10, %c0_11] : memref<64x128xbf16, #tpu.memory_space<vmem>>, vector<64x128xbf16>
    %cst_12 = arith.constant dense<0.000000e+00> : vector<8x128xf32>
    %16 = tpu.matmul %14, %15, %cst_12 {dimension_numbers = #tpu.dot_dimension_numbers<[1], [0], [0], [1], [0, 0, 1, 1], [], []>} : vector<8x64xbf16>, vector<64x128xbf16>, vector<8x128xf32> -> vector<8x128xf32>
    %c0_13 = arith.constant 0 : index
    %c0_14 = arith.constant 0 : index
    %17 = vector.load %arg7[%c0_13, %c0_14] : memref<1x128xf32, #tpu.memory_space<vmem>>, vector<1x128xf32>
    %18 = vector.broadcast %17 : vector<1x128xf32> to vector<8x128xf32>
    %19 = arith.addf %16, %18 : vector<8x128xf32>
    %20 = tpu.iota {dimensions = array<i32: 1>} : vector<8x128xi32>
    %c10_i32 = arith.constant 10 : i32
    %21 = vector.broadcast %c10_i32 : i32 to vector<8x128xi32>
    %22 = arith.cmpi slt, %20, %21 : vector<8x128xi32>
    %cst_15 = arith.constant -1.000000e+30 : f32
    %23 = vector.broadcast %cst_15 : f32 to vector<8x128xf32>
    %24 = arith.select %22, %19, %23 : vector<8x128xi1>, vector<8x128xf32>
    %cst_16 = arith.constant dense<0xFF800000> : vector<8xf32>
    %25 = vector.multi_reduction <maximumf>, %24, %cst_16 [1] : vector<8x128xf32> to vector<8xf32>
    %26 = vector.shape_cast %25 : vector<8xf32> to vector<8x1xf32>
    %27 = vector.broadcast %26 : vector<8x1xf32> to vector<8x128xf32>
    %28 = arith.subf %19, %27 : vector<8x128xf32>
    %29 = math.exp %28 : vector<8x128xf32>
    %cst_17 = arith.constant 0.000000e+00 : f32
    %30 = vector.broadcast %cst_17 : f32 to vector<8x128xf32>
    %31 = arith.select %22, %29, %30 : vector<8x128xi1>, vector<8x128xf32>
    %cst_18 = arith.constant dense<0.000000e+00> : vector<8xf32>
    %32 = vector.multi_reduction <add>, %31, %cst_18 [1] : vector<8x128xf32> to vector<8xf32>
    %33 = vector.shape_cast %32 : vector<8xf32> to vector<8x1xf32>
    %34 = vector.broadcast %33 : vector<8x1xf32> to vector<8x128xf32>
    %35 = arith.divf %31, %34 : vector<8x128xf32>
    %36 = arith.select %22, %35, %19 : vector<8x128xi1>, vector<8x128xf32>
    %c0_19 = arith.constant 0 : index
    %c0_20 = arith.constant 0 : index
    %37 = vector.load %arg8[%c0_19, %c0_20] : memref<8x128xf32, #tpu.memory_space<vmem>>, vector<8x128xf32>
    tpu.vector_store %arg8[%c0_19, %c0_20], %36 {strides = array<i32>} : memref<8x128xf32, #tpu.memory_space<vmem>>, vector<8x128xf32>,
    return
  }
  func.func @transform_0(%arg0: i32) -> (i32, i32) {
    %c0_i32 = arith.constant 0 : i32
    %c0_i32_0 = arith.constant 0 : i32
    return %arg0, %c0_i32 : i32, i32
  }
  func.func @transform_1(%arg0: i32) -> (i32, i32) {
    %c0_i32 = arith.constant 0 : i32
    %c0_i32_0 = arith.constant 0 : i32
    %c0_i32_1 = arith.constant 0 : i32
    return %c0_i32, %c0_i32_0 : i32, i32
  }
  func.func @transform_2(%arg0: i32) -> (i32, i32) {
    %c0_i32 = arith.constant 0 : i32
    %c0_i32_0 = arith.constant 0 : i32
    %c0_i32_1 = arith.constant 0 : i32
    return %c0_i32, %c0_i32_0 : i32, i32
  }
  func.func @transform_3(%arg0: i32) -> (i32, i32) {
    %c0_i32 = arith.constant 0 : i32
    %c0_i32_0 = arith.constant 0 : i32
    %c0_i32_1 = arith.constant 0 : i32
    return %c0_i32, %c0_i32_0 : i32, i32
  }
  func.func @transform_4(%arg0: i32) -> (i32, i32) {
    %c0_i32 = arith.constant 0 : i32
    %c0_i32_0 = arith.constant 0 : i32
    %c0_i32_1 = arith.constant 0 : i32
    return %c0_i32, %c0_i32_0 : i32, i32
  }
  func.func @transform_5(%arg0: i32) -> (i32, i32) {
    %c0_i32 = arith.constant 0 : i32
    %c0_i32_0 = arith.constant 0 : i32
    %c0_i32_1 = arith.constant 0 : i32
    return %c0_i32, %c0_i32_0 : i32, i32
  }
  func.func @transform_6(%arg0: i32) -> (i32, i32) {
    %c0_i32 = arith.constant 0 : i32
    %c0_i32_0 = arith.constant 0 : i32
    %c0_i32_1 = arith.constant 0 : i32
    return %c0_i32, %c0_i32_0 : i32, i32
  }
  func.func @transform_7(%arg0: i32) -> (i32, i32) {
    %c0_i32 = arith.constant 0 : i32
    %c0_i32_0 = arith.constant 0 : i32
    return %arg0, %c0_i32 : i32, i32
  }
}

</mosaic_0001>

<llo_original>
// kernel: tpu_custom_call.1
$region0: #{tpu_custom_call.1}
  #allocation0 [shape = 'u32[]', space=smem, size = 0x4, offset = 0x4, fixed_abs, tag = 'smem constant byte address 0x4 - core index']
  #allocation1 [shape = 'u32[72,128]{1,0:T(1,128)}', space=vmem, size = 0x9000, scoped, tag = 'internal scratch']
  %s0 = inlined_call_operand.hbm [shape: bf16[8,16], index: 0, kind: input, shape index: {}]
  %s1 = inlined_call_operand.hbm [shape: bf16[16,64], index: 1, kind: input, shape index: {}]
  %s2 = inlined_call_operand.vmem [shape: f32[1,64], index: 2, kind: input, shape index: {}]
  %s3 = inlined_call_operand.hbm [shape: bf16[64,64], index: 3, kind: input, shape index: {}]
  %s4 = inlined_call_operand.vmem [shape: f32[1,64], index: 4, kind: input, shape index: {}]
  %s5 = inlined_call_operand.hbm [shape: bf16[64,128], index: 5, kind: input, shape index: {}]
  %s6 = inlined_call_operand.vmem [shape: f32[1,128], index: 6, kind: input, shape index: {}]
  %s7 = inlined_call_operand.hbm [shape: f32[8,128], index: 7, kind: output, shape index: {}]
  %s8 = sld [smem:[#allocation0]]
  $region54: #{tpu_custom_call.1} parent=0
    _
  %s10 = ssub.s32 1, %s8
  %s11 = scalar_select 0, %s10, %s8
  $region1: #{tpu_custom_call.1} parent=0
    #allocation2 [shape = 'u8[2048]{0}', space=vmem, size = 0x800, scoped, tag = 'input window, operand 0, single buffered']
    #allocation3 [shape = 's32[1]{0}', space=sflag, size = 0x4, scoped, tag = 'scoped memory for tpu_custom_call.1']
    #allocation4 [shape = 's32[1]{0}', space=sflag, size = 0x4, scoped, tag = 'scoped memory for tpu_custom_call.1']
    #allocation5 [shape = 'u8[4096]{0}', space=vmem, size = 0x1000, scoped, tag = 'input window, operand 1, single buffered']
    #allocation6 [shape = 's32[1]{0}', space=sflag, size = 0x4, scoped, tag = 'scoped memory for tpu_custom_call.1']
    #allocation7 [shape = 'u8[16384]{0}', space=vmem, size = 0x4000, scoped, tag = 'input window, operand 3, single buffered']
    #allocation8 [shape = 'u8[16384]{0}', space=vmem, size = 0x4000, scoped, tag = 'input window, operand 5, single buffered']
    #allocation9 [shape = 's32[1]{0}', space=sflag, size = 0x4, scoped, tag = 'scoped memory for tpu_custom_call.1']
    #allocation10 [shape = 'u8[4096]{0}', space=vmem, size = 0x1000, scoped, tag = 'output window, operand 0, single buffered']
    %12 = vsyncpa [#allocation3], 0
    %13 = vsyncpa [#allocation6], 0
    %14 = vsyncpa [#allocation9], 0
    %15 = vsyncpa [#allocation4], 0
    // Predicated region
    $region2: #{tpu_custom_call.1} parent=1 // pred_check
      _
    $region3: #{tpu_custom_call.1} parent=1 // pred_check_branch
      %17 = sbr.rel (0) target = $region5
    $region4: #{tpu_custom_call.1} parent=1 // pred_region
      %19 = vsyncadd [#allocation3], 0
      %s21 = sshll.u32 %s0, 4
      %s22 = int_to_ptr.hbm [resolvable:$true] %s21
      %s23 = sshll.u32 [#allocation2], 4
      %s24 = int_to_ptr.vmem [resolvable:$true] %s23
      %26 = dma.hbm_to_vmem [thread:$0]  %s22, 64, %s24, [#allocation3]
    $region5: #{tpu_custom_call.1} parent=1 // pred_fallthru
      _
    // Predicated region
    $region6: #{tpu_custom_call.1} parent=1 // pred_check
      _
    $region7: #{tpu_custom_call.1} parent=1 // pred_check_branch
      %28 = sbr.rel (0) target = $region9
    $region8: #{tpu_custom_call.1} parent=1 // pred_region
      %30 = vsyncadd [#allocation6], 0
      %s31 = sshll.u32 %s1, 4
      %s32 = int_to_ptr.hbm [resolvable:$true] %s31
      %s33 = sshll.u32 [#allocation5], 4
      %s34 = int_to_ptr.vmem [resolvable:$true] %s33
      %39 = dma.hbm_to_vmem [thread:$0]  %s32, 128, %s34, [#allocation6], 64, 64, 4
    $region9: #{tpu_custom_call.1} parent=1 // pred_fallthru
      _
    // Predicated region
    $region10: #{tpu_custom_call.1} parent=1 // pred_check
      _
    $region11: #{tpu_custom_call.1} parent=1 // pred_check_branch
      %41 = sbr.rel (0) target = $region13
    $region12: #{tpu_custom_call.1} parent=1 // pred_region
      _
    $region13: #{tpu_custom_call.1} parent=1 // pred_fallthru
      _
    // Predicated region
    $region14: #{tpu_custom_call.1} parent=1 // pred_check
      _
    $region15: #{tpu_custom_call.1} parent=1 // pred_check_branch
      %43 = sbr.rel (0) target = $region17
    $region16: #{tpu_custom_call.1} parent=1 // pred_region
      %45 = vsyncadd [#allocation6], 0
      %s46 = sshll.u32 %s3, 4
      %s47 = int_to_ptr.hbm [resolvable:$true] %s46
      %s48 = sshll.u32 [#allocation7], 4
      %s49 = int_to_ptr.vmem [resolvable:$true] %s48
      %54 = dma.hbm_to_vmem [thread:$0]  %s47, 512, %s49, [#allocation6], 64, 64, 4
    $region17: #{tpu_custom_call.1} parent=1 // pred_fallthru
      _
    // Predicated region
    $region18: #{tpu_custom_call.1} parent=1 // pred_check
      _
    $region19: #{tpu_custom_call.1} parent=1 // pred_check_branch
      %56 = sbr.rel (0) target = $region21
    $region20: #{tpu_custom_call.1} parent=1 // pred_region
      _
    $region21: #{tpu_custom_call.1} parent=1 // pred_fallthru
      _
    // Predicated region
    $region22: #{tpu_custom_call.1} parent=1 // pred_check
      _
    $region23: #{tpu_custom_call.1} parent=1 // pred_check_branch
      %58 = sbr.rel (0) target = $region25
    $region24: #{tpu_custom_call.1} parent=1 // pred_region
      %60 = vsyncadd [#allocation9], 0
      %s61 = sshll.u32 %s5, 4
      %s62 = int_to_ptr.hbm [resolvable:$true] %s61
      %s63 = sshll.u32 [#allocation8], 4
      %s64 = int_to_ptr.vmem [resolvable:$true] %s63
      %69 = dma.hbm_to_vmem [thread:$0]  %s62, 512, %s64, [#allocation9], 64, 64, 4
    $region25: #{tpu_custom_call.1} parent=1 // pred_fallthru
      _
    // Predicated region
    $region26: #{tpu_custom_call.1} parent=1 // pred_check
      _
    $region27: #{tpu_custom_call.1} parent=1 // pred_check_branch
      %71 = sbr.rel (0) target = $region29
    $region28: #{tpu_custom_call.1} parent=1 // pred_region
      _
    $region29: #{tpu_custom_call.1} parent=1 // pred_fallthru
      _
    // Predicated region
    $region30: #{tpu_custom_call.1} parent=1 // pred_check
      _
    $region31: #{tpu_custom_call.1} parent=1 // pred_check_branch
      %73 = sbr.rel (0) target = $region33
    $region32: #{tpu_custom_call.1} parent=1 // pred_region
      %75 = dma.done [#allocation3], 64
    $region33: #{tpu_custom_call.1} parent=1 // pred_fallthru
      _
    // Predicated region
    $region34: #{tpu_custom_call.1} parent=1 // pred_check
      _
    $region35: #{tpu_custom_call.1} parent=1 // pred_check_branch
      %77 = sbr.rel (0) target = $region37
    $region36: #{tpu_custom_call.1} parent=1 // pred_region
      %79 = dma.done [#allocation6], 128
    $region37: #{tpu_custom_call.1} parent=1 // pred_fallthru
      _
    // Predicated region
    $region38: #{tpu_custom_call.1} parent=1 // pred_check
      _
    $region39: #{tpu_custom_call.1} parent=1 // pred_check_branch
      %81 = sbr.rel (0) target = $region41
    $region40: #{tpu_custom_call.1} parent=1 // pred_region
      %83 = dma.done [#allocation6], 512
    $region41: #{tpu_custom_call.1} parent=1 // pred_fallthru
      _
    // Predicated region
    $region42: #{tpu_custom_call.1} parent=1 // pred_check
      _
    $region43: #{tpu_custom_call.1} parent=1 // pred_check_branch
      %85 = sbr.rel (0) target = $region45
    $region44: #{tpu_custom_call.1} parent=1 // pred_region
      %87 = dma.done [#allocation9], 512
    $region45: #{tpu_custom_call.1} parent=1 // pred_fallthru
      _
    %v89 = vld [vmem:[#allocation2] sm:$0xf]
    %v90 = vld [vmem:[#allocation5] sm:$0xf]
    %v91 = vld [vmem:[#allocation5 + $0x4] sm:$0xf]
    %v92 = vld [vmem:[%s2] sm:$0x1]
    %v94 = vperm.slane %v92, 0
    %v98 = vunpack.c.l.b16 %v90
    %v99 = vunpack.c.l.b16 %v91
    %v100 = vpack.c.b16 %v99, %v98
    %vm102 = vcmask 130048
    %v104 = vsel %vm102, %v89, 0
    %106 = vmatpush.bf16.msra.mxu0 0
    %107 = vmatpush.bf16.msra.mxu0 0
    %108 = vmatpush.bf16.msra.mxu0 0
    %109 = vmatpush.bf16.msra.mxu0 0
    %110 = vmatpush.bf16.msra.mxu0 0
    %111 = vmatpush.bf16.msra.mxu0 0
    %112 = vmatpush.bf16.msra.mxu0 0
    %113 = vmatpush.bf16.msra.mxu0 %v100
    %114 = vmatmul.bf16.gmra.mxu0 %v104
    %v115 = vpop.f32.mrf.mxu0
    %v116 = vadd.f32 %v94, %v115
    %v117 = vpop.f32.mrf.mxu0
    %118 = vdwg.mxu0
    %v119 = vtanh.pop %v116
    %v120 = vpack.c.bf16 %v119, %v119
    %v121 = vld [vmem:[#allocation7] sm:$0xf]
    %v122 = vld [vmem:[#allocation7 + $0x4] sm:$0xf]
    %v123 = vld [vmem:[#allocation7 + $0x8] sm:$0xf]
    %v124 = vld [vmem:[#allocation7 + $0xc] sm:$0xf]
    %v125 = vld [vmem:[#allocation7 + $0x10] sm:$0xf]
    %v126 = vld [vmem:[#allocation7 + $0x14] sm:$0xf]
    %v127 = vld [vmem:[#allocation7 + $0x18] sm:$0xf]
    %v128 = vld [vmem:[#allocation7 + $0x1c] sm:$0xf]
    %v129 = vld [vmem:[%s4] sm:$0x1]
    %v131 = vperm.slane %v129, 0
    %v141 = vunpack.c.l.b16 %v121
    %v142 = vunpack.c.l.b16 %v122
    %v143 = vunpack.c.l.b16 %v123
    %v144 = vunpack.c.l.b16 %v124
    %v145 = vunpack.c.l.b16 %v125
    %v146 = vunpack.c.l.b16 %v126
    %v147 = vunpack.c.l.b16 %v127
    %v148 = vunpack.c.l.b16 %v128
    %v149 = vpack.c.b16 %v142, %v141
    %v150 = vpack.c.b16 %v144, %v143
    %v151 = vpack.c.b16 %v146, %v145
    %v152 = vpack.c.b16 %v148, %v147
    %vm157 = vcmask 523264
    %v159 = vsel %vm157, %v120, 0
    %161 = vmatpush.bf16.msra.mxu0 0
    %162 = vmatpush.bf16.msra.mxu0 0
    %163 = vmatpush.bf16.msra.mxu0 0
    %164 = vmatpush.bf16.msra.mxu0 0
    %165 = vmatpush.bf16.msra.mxu0 %v152
    %166 = vmatpush.bf16.msra.mxu0 %v151
    %167 = vmatpush.bf16.msra.mxu0 %v150
    %168 = vmatpush.bf16.msra.mxu0 %v149
    %169 = vmatmul.bf16.gmra.mxu0 %v159
    %v170 = vpop.f32.mrf.mxu0
    %v171 = vadd.f32 %v131, %v170
    %v172 = vpop.f32.mrf.mxu0
    %173 = vdwg.mxu0
    %v174 = vtanh.pop %v171
    %v175 = vpack.c.bf16 %v174, %v174
    %v176 = vld [vmem:[#allocation8] sm:$0xf]
    %v177 = vld [vmem:[#allocation8 + $0x4] sm:$0xf]
    %v178 = vld [vmem:[#allocation8 + $0x8] sm:$0xf]
    %v179 = vld [vmem:[#allocation8 + $0xc] sm:$0xf]
    %v180 = vld [vmem:[#allocation8 + $0x10] sm:$0xf]
    %v181 = vld [vmem:[#allocation8 + $0x14] sm:$0xf]
    %v182 = vld [vmem:[#allocation8 + $0x18] sm:$0xf]
    %v183 = vld [vmem:[#allocation8 + $0x1c] sm:$0xf]
    %v184 = vld [vmem:[%s6] sm:$0x1]
    %v186 = vperm.slane %v184, 0
    %v196 = vunpack.c.l.b16 %v176
    %v197 = vunpack.c.l.b16 %v177
    %v198 = vunpack.c.l.b16 %v178
    %v199 = vunpack.c.l.b16 %v179
    %v200 = vunpack.c.l.b16 %v180
    %v201 = vunpack.c.l.b16 %v181
    %v202 = vunpack.c.l.b16 %v182
    %v203 = vunpack.c.l.b16 %v183
    %v204 = vpack.c.b16 %v197, %v196
    %v205 = vpack.c.b16 %v199, %v198
    %v206 = vpack.c.b16 %v201, %v200
    %v207 = vpack.c.b16 %v203, %v202
    %v213 = vsel %vm157, %v175, 0
    %215 = vmatpush.bf16.msra.mxu0 0
    %216 = vmatpush.bf16.msra.mxu0 0
    %217 = vmatpush.bf16.msra.mxu0 0
    %218 = vmatpush.bf16.msra.mxu0 0
    %219 = vmatpush.bf16.msra.mxu0 %v207
    %220 = vmatpush.bf16.msra.mxu0 %v206
    %221 = vmatpush.bf16.msra.mxu0 %v205
    %222 = vmatpush.bf16.msra.mxu0 %v204
    %223 = vmatmul.bf16.gmra.mxu0 %v213
    %v224 = vpop.f32.mrf.mxu0
    %v225 = vadd.f32 %v186, %v224
    %v226 = vpop.f32.mrf.mxu0
    %227 = vdwg.mxu0
    %v228 = vlaneseq
    %v229 = vand.u32 %v228, 127
    %vm230 = vcmp.lt.s32.totalorder %v229, 10
    %v231 = vsel %vm230, %v225, -1e+30
    %232 = vmax.xlane.f32.xlu0 %v231
    %v233 = vpop.xlane.xlu0 %232
    %v234 = vsub.f32 %v225, %v233
    %v235 = vmul.f32 %v234, 1.442695
    %v236 = vpow.pop %v235
    %v237 = vsel %vm230, %v236, 0.0
    %238 = vadd.xlane.f32.xlu0 %v237
    %v239 = vpop.xlane.xlu0 %238
    %v240 = vrcp.pop %v239
    %v241 = vmul.f32 %v239, %v240
    %v242 = vsub.f32 1.0, %v241
    %v243 = vmul.f32 %v240, %v242
    %v244 = vadd.f32 %v240, %v243
    %vm245 = vweird.f32 %v239
    %vm246 = vweird.f32 %v240
    %vm247 = vmor %vm245, %vm246
    %v248 = vsel %vm247, %v240, %v244
    %v249 = vand.u32 2147483647, %v239
    %vm250 = vcmp.eq.f32.partialorder %v249, 8.507059e+37
    %v251 = vand.u32 %v239, 2147483648
    %v252 = vor.u32 1.1754944e-38, %v251
    %v253 = vsel %vm250, %v252, %v248
    %v254 = vmul.f32 %v237, %v253
    %v255 = vsel %vm230, %v254, %v225
    %256 = vst [vmem:[#allocation10] sm:$0xff] %v255
    // Predicated region
    $region46: #{tpu_custom_call.1} parent=1 // pred_check
      _
    $region47: #{tpu_custom_call.1} parent=1 // pred_check_branch
      %258 = sbr.rel (0) target = $region49
    $region48: #{tpu_custom_call.1} parent=1 // pred_region
      %260 = vsyncadd [#allocation4], 0
      %s262 = sshll.u32 [#allocation10], 4
      %s263 = int_to_ptr.vmem [resolvable:$true] %s262
      %s264 = sshll.u32 %s7, 4
      %s265 = int_to_ptr.hbm [resolvable:$true] %s264
      %267 = dma.vmem_to_hbm [thread:$0]  %s263, 128, %s265, [#allocation4]
    $region49: #{tpu_custom_call.1} parent=1 // pred_fallthru
      _
    // Predicated region
    $region50: #{tpu_custom_call.1} parent=1 // pred_check
      _
    $region51: #{tpu_custom_call.1} parent=1 // pred_check_branch
      %269 = sbr.rel (0) target = $region53
    $region52: #{tpu_custom_call.1} parent=1 // pred_region
      %271 = dma.done [#allocation4], 128
    $region53: #{tpu_custom_call.1} parent=1 // pred_fallthru
      _
    %272 = vsyncpa [#allocation3], 1
    %273 = vsyncpa [#allocation6], 1
    %274 = vsyncpa [#allocation9], 1
    %275 = vsyncpa [#allocation4], 1

</llo_original>
